<compile_context>
chip_gen: v7x
topology: tpu7x:2x2x1
jax: 0.10.0
libtpu: 0.0.40
codegen_flags: <defaults>
</compile_context>

<pallas_src>
import jax
import jax.numpy as jnp
from jax.experimental import pallas as pl
from jax.experimental.pallas import tpu as pltpu

IN_DIM = 28 * 28   # 784
HID_DIM = 128
OUT_DIM = 10
OUT_PAD = 128      # lane-dense padded output width
TB_MAX = 1024      # max batch tile (sized for v7x VMEM)


def _abs2_kernel(x_ref, w0t_ref, b0_ref, w1t_ref, o_ref):
    # Fused: matmul -> +bias -> abs -> (identity perturbation) -> matmul -> abs, all in VMEM.
    x = x_ref[...]                                        # (TB, 784)
    h = jnp.dot(x, w0t_ref[...],
                preferred_element_type=jnp.float32)       # (TB, 128) on MXU, f32 acc
    h = jnp.abs(h + b0_ref[...])                          # bias broadcast + Abs()
    # PerturbationLayer in its reset state is an identity -> no-op here.
    y = jnp.dot(h, w1t_ref[...],
                preferred_element_type=jnp.float32)       # (TB, 128) padded; cols 10.. are 0
    o_ref[...] = jnp.abs(y).astype(o_ref.dtype)           # Abs(); abs(0)=0 on pad cols


def prepare_params(w0, b0, w1):
    """Hoisted one-time parameter prep: transpose, reshape, and lane-pad W1^T."""
    w0t = jnp.asarray(w0, jnp.float32).T                          # (784, 128)
    b0_2d = jnp.asarray(b0, jnp.float32).reshape(1, HID_DIM)      # (1, 128)
    w1t = jnp.asarray(w1, jnp.float32).T                          # (128, 10)
    w1t_pad = jnp.zeros((HID_DIM, OUT_PAD), jnp.float32).at[:, :OUT_DIM].set(w1t)
    return w0t, b0_2d, w1t_pad


@jax.jit
def model_abs2_forward(x, w0t, b0_2d, w1t_pad):
    """x: (B, 784) f32; w0t: (784, 128); b0_2d: (1, 128); w1t_pad: (128, 128) -> (B, 10)."""
    B = x.shape[0]

    # Tile heuristic: split batch into n equal-ish tiles capped at TB_MAX rows,
    # each a multiple of 8 (sublane aligned).  Minimizes batch padding.
    n_tiles = max(1, -(-B // TB_MAX))          # cdiv(B, TB_MAX)
    tb = -(-B // n_tiles)                      # cdiv(B, n_tiles)
    tb = max(8, ((tb + 7) // 8) * 8)           # round up to multiple of 8
    b_pad = n_tiles * tb
    if b_pad != B:
        x = jnp.pad(x, ((0, b_pad - B), (0, 0)))

    cost = pl.CostEstimate(
        flops=2 * b_pad * (IN_DIM * HID_DIM + HID_DIM * OUT_PAD),
        bytes_accessed=(b_pad * IN_DIM * 4 + b_pad * OUT_PAD * 4
                        + (IN_DIM * HID_DIM + HID_DIM + HID_DIM * OUT_PAD) * 4),
        transcendentals=0,
    )

    out = pl.pallas_call(
        _abs2_kernel,
        out_shape=jax.ShapeDtypeStruct((b_pad, OUT_PAD), jnp.float32),
        grid_spec=pltpu.PrefetchScalarGridSpec(
            num_scalar_prefetch=0,
            grid=(n_tiles,),
            in_specs=[
                pl.BlockSpec((tb, IN_DIM), lambda i: (i, 0)),        # x streams per tile
                pl.BlockSpec((IN_DIM, HID_DIM), lambda i: (0, 0)),   # W0^T resident
                pl.BlockSpec((1, HID_DIM), lambda i: (0, 0)),        # b0 resident
                pl.BlockSpec((HID_DIM, OUT_PAD), lambda i: (0, 0)),  # W1^T (padded) resident
            ],
            out_specs=pl.BlockSpec((tb, OUT_PAD), lambda i: (i, 0)),
        ),
        compiler_params=pltpu.CompilerParams(
            dimension_semantics=("parallel",)),
        cost_estimate=cost,
    )(x, w0t, b0_2d, w1t_pad)

    return out[:B, :OUT_DIM]


if __name__ == "__main__":
    key = jax.random.PRNGKey(0)
    kx, kw0, kb0, kw1 = jax.random.split(key, 4)

    B = 2
    x = jax.random.normal(kx, (B, IN_DIM), dtype=jnp.float32)

    # Deterministic parameter init (PyTorch-Linear-style uniform bounds).
    bound0 = 1.0 / (IN_DIM ** 0.5)
    w0 = jax.random.uniform(kw0, (HID_DIM, IN_DIM), jnp.float32, -bound0, bound0)
    b0 = jax.random.uniform(kb0, (HID_DIM,), jnp.float32, -bound0, bound0)
    bound1 = 1.0 / (HID_DIM ** 0.5)
    w1 = jax.random.uniform(kw1, (OUT_DIM, HID_DIM), jnp.float32, -bound1, bound1)

    # One-time parameter prep (hoisted out of the forward path).
    w0t, b0_2d, w1t_pad = prepare_params(w0, b0, w1)

    y = model_abs2_forward(x, w0t, b0_2d, w1t_pad)
    y = jax.block_until_ready(y)

    # Reference check in plain JAX.
    h_ref = jnp.abs(x @ w0.T + b0)
    y_ref = jnp.abs(h_ref @ w1.T)
    assert y.shape == (B, OUT_DIM)
    assert jnp.allclose(y, y_ref, atol=1e-5, rtol=1e-5)

    print("KERNEL_OK")
</pallas_src>

<mosaic_0001>
module attributes {stable_mosaic.version = 11 : i64} {
  func.func @_abs2_kernel(%arg0: i32, %arg1: memref<8x784xf32, #tpu.memory_space<vmem>>, %arg2: memref<784x128xf32, #tpu.memory_space<vmem>>, %arg3: memref<1x128xf32, #tpu.memory_space<vmem>>, %arg4: memref<128x128xf32, #tpu.memory_space<vmem>>, %arg5: memref<8x128xf32, #tpu.memory_space<vmem>>) attributes {dimension_semantics = [#tpu.dimension_semantics<parallel>], iteration_bounds = array<i64: 1>, scalar_prefetch = 0 : i64, scratch_operands = 0 : i64, tpu.core_type = #tpu.core_type<tc>, window_params = [{transform_indices = @transform_0, window_bounds = array<i64: 8, 784>}, {pipeline_mode = #tpu.pipeline_mode<synchronous>, transform_indices = @transform_1, window_bounds = array<i64: 784, 128>}, {pipeline_mode = #tpu.pipeline_mode<synchronous>, transform_indices = @transform_2, window_bounds = array<i64: 1, 128>}, {pipeline_mode = #tpu.pipeline_mode<synchronous>, transform_indices = @transform_3, window_bounds = array<i64: 128, 128>}, {transform_indices = @transform_4, window_bounds = array<i64: 8, 128>}]} {
    %c0 = arith.constant 0 : index
    %c0_0 = arith.constant 0 : index
    %0 = vector.load %arg1[%c0, %c0_0] : memref<8x784xf32, #tpu.memory_space<vmem>>, vector<8x784xf32>
    %c0_1 = arith.constant 0 : index
    %c0_2 = arith.constant 0 : index
    %1 = vector.load %arg2[%c0_1, %c0_2] : memref<784x128xf32, #tpu.memory_space<vmem>>, vector<784x128xf32>
    %cst = arith.constant dense<0.000000e+00> : vector<8x128xf32>
    %2 = tpu.matmul %0, %1, %cst {dimension_numbers = #tpu.dot_dimension_numbers<[1], [0], [0], [1], [0, 0, 1, 1], [], []>} : vector<8x784xf32>, vector<784x128xf32>, vector<8x128xf32> -> vector<8x128xf32>
    %c0_3 = arith.constant 0 : index
    %c0_4 = arith.constant 0 : index
    %3 = vector.load %arg3[%c0_3, %c0_4] : memref<1x128xf32, #tpu.memory_space<vmem>>, vector<1x128xf32>
    %4 = vector.broadcast %3 : vector<1x128xf32> to vector<8x128xf32>
    %5 = arith.addf %2, %4 : vector<8x128xf32>
    %6 = math.absf %5 : vector<8x128xf32>
    %c0_5 = arith.constant 0 : index
    %c0_6 = arith.constant 0 : index
    %7 = vector.load %arg4[%c0_5, %c0_6] : memref<128x128xf32, #tpu.memory_space<vmem>>, vector<128x128xf32>
    %cst_7 = arith.constant dense<0.000000e+00> : vector<8x128xf32>
    %8 = tpu.matmul %6, %7, %cst_7 {dimension_numbers = #tpu.dot_dimension_numbers<[1], [0], [0], [1], [0, 0, 1, 1], [], []>} : vector<8x128xf32>, vector<128x128xf32>, vector<8x128xf32> -> vector<8x128xf32>
    %9 = math.absf %8 : vector<8x128xf32>
    %c0_8 = arith.constant 0 : index
    %c0_9 = arith.constant 0 : index
    %10 = vector.load %arg5[%c0_8, %c0_9] : memref<8x128xf32, #tpu.memory_space<vmem>>, vector<8x128xf32>
    tpu.vector_store %arg5[%c0_8, %c0_9], %9 {strides = array<i32>} : memref<8x128xf32, #tpu.memory_space<vmem>>, vector<8x128xf32>,
    return
  }
  func.func @transform_0(%arg0: i32) -> (i32, i32) {
    %c0_i32 = arith.constant 0 : i32
    %c0_i32_0 = arith.constant 0 : i32
    return %arg0, %c0_i32 : i32, i32
  }
  func.func @transform_1(%arg0: i32) -> (i32, i32) {
    %c0_i32 = arith.constant 0 : i32
    %c0_i32_0 = arith.constant 0 : i32
    %c0_i32_1 = arith.constant 0 : i32
    return %c0_i32, %c0_i32_0 : i32, i32
  }
  func.func @transform_2(%arg0: i32) -> (i32, i32) {
    %c0_i32 = arith.constant 0 : i32
    %c0_i32_0 = arith.constant 0 : i32
    %c0_i32_1 = arith.constant 0 : i32
    return %c0_i32, %c0_i32_0 : i32, i32
  }
  func.func @transform_3(%arg0: i32) -> (i32, i32) {
    %c0_i32 = arith.constant 0 : i32
    %c0_i32_0 = arith.constant 0 : i32
    %c0_i32_1 = arith.constant 0 : i32
    return %c0_i32, %c0_i32_0 : i32, i32
  }
  func.func @transform_4(%arg0: i32) -> (i32, i32) {
    %c0_i32 = arith.constant 0 : i32
    %c0_i32_0 = arith.constant 0 : i32
    return %arg0, %c0_i32 : i32, i32
  }
}

</mosaic_0001>

<llo_original>
// kernel: model_abs2_forward.1
$region0: #{model_abs2_forward.1}
  #allocation0 [shape = 'u32[]', space=smem, size = 0x4, offset = 0x4, fixed_abs, tag = 'smem constant byte address 0x4 - core index']
  #allocation1 [shape = 'u32[144,128]{1,0:T(1,128)}', space=vmem, size = 0x12000, scoped, tag = 'internal scratch']
  %s0 = inlined_call_operand.vmem [shape: f32[8,784], index: 0, kind: input, shape index: {}]
  %s1 = inlined_call_operand.hbm [shape: f32[784,128], index: 1, kind: input, shape index: {}]
  %s2 = inlined_call_operand.vmem [shape: f32[1,128], index: 2, kind: input, shape index: {}]
  %s3 = inlined_call_operand.hbm [shape: f32[128,128], index: 3, kind: input, shape index: {}]
  %s4 = inlined_call_operand.vmem [shape: f32[8,128], index: 4, kind: output, shape index: {}]
  %s5 = sld [smem:[#allocation0]]
  $region34: #{model_abs2_forward.1} parent=0
    _
  %s7 = ssub.s32 1, %s5
  %s8 = scalar_select 0, %s7, %s5
  $region1: #{model_abs2_forward.1} parent=0
    #allocation2 [shape = 'u8[401408]{0}', space=vmem, size = 0x62000, scoped, tag = 'input window, operand 1, single buffered']
    #allocation3 [shape = 's32[1]{0}', space=sflag, size = 0x4, scoped, tag = 'scoped memory for model_abs2_forward.1']
    #allocation4 [shape = 'u8[65536]{0}', space=vmem, size = 0x10000, scoped, tag = 'input window, operand 3, single buffered']
    #allocation5 [shape = 's32[1]{0}', space=sflag, size = 0x4, scoped, tag = 'scoped memory for model_abs2_forward.1']
    %9 = vsyncpa [#allocation3], 0
    %10 = vsyncpa [#allocation5], 0
    // Predicated region
    $region2: #{model_abs2_forward.1} parent=1 // pred_check
      _
    $region3: #{model_abs2_forward.1} parent=1 // pred_check_branch
      %12 = sbr.rel (0) target = $region5
    $region4: #{model_abs2_forward.1} parent=1 // pred_region
      _
    $region5: #{model_abs2_forward.1} parent=1 // pred_fallthru
      _
    // Predicated region
    $region6: #{model_abs2_forward.1} parent=1 // pred_check
      _
    $region7: #{model_abs2_forward.1} parent=1 // pred_check_branch
      %14 = sbr.rel (0) target = $region9
    $region8: #{model_abs2_forward.1} parent=1 // pred_region
      %s16 = ssub.s32 12544, 12544
      %17 = vsyncadd [#allocation3], %s16
      %s18 = sshll.u32 [#allocation2], 4
      %s19 = int_to_ptr.vmem [resolvable:$true] %s18
      %24 = dma.hbm_to_vmem [thread:$0]  %s1, 12544, %s19, [#allocation3], 128, 128, 8
    $region9: #{model_abs2_forward.1} parent=1 // pred_fallthru
      _
    // Predicated region
    $region10: #{model_abs2_forward.1} parent=1 // pred_check
      _
    $region11: #{model_abs2_forward.1} parent=1 // pred_check_branch
      %26 = sbr.rel (0) target = $region13
    $region12: #{model_abs2_forward.1} parent=1 // pred_region
      _
    $region13: #{model_abs2_forward.1} parent=1 // pred_fallthru
      _
    // Predicated region
    $region14: #{model_abs2_forward.1} parent=1 // pred_check
      _
    $region15: #{model_abs2_forward.1} parent=1 // pred_check_branch
      %28 = sbr.rel (0) target = $region17
    $region16: #{model_abs2_forward.1} parent=1 // pred_region
      %s30 = ssub.s32 2048, 2048
      %31 = vsyncadd [#allocation5], %s30
      %s32 = sshll.u32 [#allocation4], 4
      %s33 = int_to_ptr.vmem [resolvable:$true] %s32
      %38 = dma.hbm_to_vmem [thread:$0]  %s3, 2048, %s33, [#allocation5], 128, 128, 8
    $region17: #{model_abs2_forward.1} parent=1 // pred_fallthru
      _
    // Predicated region
    $region18: #{model_abs2_forward.1} parent=1 // pred_check
      _
    $region19: #{model_abs2_forward.1} parent=1 // pred_check_branch
      %40 = sbr.rel (0) target = $region21
    $region20: #{model_abs2_forward.1} parent=1 // pred_region
      %41 = dma.done [#allocation3], 12544
    $region21: #{model_abs2_forward.1} parent=1 // pred_fallthru
      _
    // Predicated region
    $region22: #{model_abs2_forward.1} parent=1 // pred_check
      _
    $region23: #{model_abs2_forward.1} parent=1 // pred_check_branch
      %43 = sbr.rel (0) target = $region25
    $region24: #{model_abs2_forward.1} parent=1 // pred_region
      %44 = dma.done [#allocation5], 2048
    $region25: #{model_abs2_forward.1} parent=1 // pred_fallthru
      _
    %v45 = vld [vmem:[%s0] sm:$0xff]
    %v46 = vld [vmem:[%s0 + $0x8] sm:$0xff]
    %v47 = vld [vmem:[%s0 + $0x10] sm:$0xff]
    %v48 = vld [vmem:[%s0 + $0x18] sm:$0xff]
    %v49 = vld [vmem:[%s0 + $0x20] sm:$0xff]
    %v50 = vld [vmem:[%s0 + $0x28] sm:$0xff]
    %v51 = vld [vmem:[%s0 + $0x30] sm:$0xff]
    %v52 = vld [vmem:[#allocation2] sm:$0xff]
    %v53 = vld [vmem:[#allocation2 + $0x8] sm:$0xff]
    %v54 = vld [vmem:[#allocation2 + $0x10] sm:$0xff]
    %v55 = vld [vmem:[#allocation2 + $0x18] sm:$0xff]
    %v56 = vld [vmem:[#allocation2 + $0x20] sm:$0xff]
    %v57 = vld [vmem:[#allocation2 + $0x28] sm:$0xff]
    %v58 = vld [vmem:[#allocation2 + $0x30] sm:$0xff]
    %v59 = vld [vmem:[#allocation2 + $0x38] sm:$0xff]
    %v60 = vld [vmem:[#allocation2 + $0x40] sm:$0xff]
    %v61 = vld [vmem:[#allocation2 + $0x48] sm:$0xff]
    %v62 = vld [vmem:[#allocation2 + $0x50] sm:$0xff]
    %v63 = vld [vmem:[#allocation2 + $0x58] sm:$0xff]
    %v64 = vld [vmem:[#allocation2 + $0x60] sm:$0xff]
    %v65 = vld [vmem:[#allocation2 + $0x68] sm:$0xff]
    %v66 = vld [vmem:[#allocation2 + $0x70] sm:$0xff]
    %v67 = vld [vmem:[#allocation2 + $0x78] sm:$0xff]
    %v68 = vld [vmem:[#allocation2 + $0x80] sm:$0xff]
    %v69 = vld [vmem:[#allocation2 + $0x88] sm:$0xff]
    %v70 = vld [vmem:[#allocation2 + $0x90] sm:$0xff]
    %v71 = vld [vmem:[#allocation2 + $0x98] sm:$0xff]
    %v72 = vld [vmem:[#allocation2 + $0xa0] sm:$0xff]
    %v73 = vld [vmem:[#allocation2 + $0xa8] sm:$0xff]
    %v74 = vld [vmem:[#allocation2 + $0xb0] sm:$0xff]
    %v75 = vld [vmem:[#allocation2 + $0xb8] sm:$0xff]
    %v76 = vld [vmem:[#allocation2 + $0xc0] sm:$0xff]
    %v77 = vld [vmem:[#allocation2 + $0xc8] sm:$0xff]
    %v78 = vld [vmem:[#allocation2 + $0xd0] sm:$0xff]
    %v79 = vld [vmem:[#allocation2 + $0xd8] sm:$0xff]
    %v80 = vld [vmem:[#allocation2 + $0xe0] sm:$0xff]
    %v81 = vld [vmem:[#allocation2 + $0xe8] sm:$0xff]
    %v82 = vld [vmem:[#allocation2 + $0xf0] sm:$0xff]
    %v83 = vld [vmem:[#allocation2 + $0xf8] sm:$0xff]
    %v84 = vld [vmem:[#allocation2 + $0x100] sm:$0xff]
    %v85 = vld [vmem:[#allocation2 + $0x108] sm:$0xff]
    %v86 = vld [vmem:[#allocation2 + $0x110] sm:$0xff]
    %v87 = vld [vmem:[#allocation2 + $0x118] sm:$0xff]
    %v88 = vld [vmem:[#allocation2 + $0x120] sm:$0xff]
    %v89 = vld [vmem:[#allocation2 + $0x128] sm:$0xff]
    %v90 = vld [vmem:[#allocation2 + $0x130] sm:$0xff]
    %v91 = vld [vmem:[#allocation2 + $0x138] sm:$0xff]
    %v92 = vld [vmem:[#allocation2 + $0x140] sm:$0xff]
    %v93 = vld [vmem:[#allocation2 + $0x148] sm:$0xff]
    %v94 = vld [vmem:[#allocation2 + $0x150] sm:$0xff]
    %v95 = vld [vmem:[#allocation2 + $0x158] sm:$0xff]
    %v96 = vld [vmem:[#allocation2 + $0x160] sm:$0xff]
    %v97 = vld [vmem:[#allocation2 + $0x168] sm:$0xff]
    %v98 = vld [vmem:[#allocation2 + $0x170] sm:$0xff]
    %v99 = vld [vmem:[#allocation2 + $0x178] sm:$0xff]
    %v100 = vld [vmem:[#allocation2 + $0x180] sm:$0xff]
    %v101 = vld [vmem:[#allocation2 + $0x188] sm:$0xff]
    %v102 = vld [vmem:[#allocation2 + $0x190] sm:$0xff]
    %v103 = vld [vmem:[#allocation2 + $0x198] sm:$0xff]
    %v104 = vld [vmem:[#allocation2 + $0x1a0] sm:$0xff]
    %v105 = vld [vmem:[#allocation2 + $0x1a8] sm:$0xff]
    %v106 = vld [vmem:[#allocation2 + $0x1b0] sm:$0xff]
    %v107 = vld [vmem:[#allocation2 + $0x1b8] sm:$0xff]
    %v108 = vld [vmem:[#allocation2 + $0x1c0] sm:$0xff]
    %v109 = vld [vmem:[#allocation2 + $0x1c8] sm:$0xff]
    %v110 = vld [vmem:[#allocation2 + $0x1d0] sm:$0xff]
    %v111 = vld [vmem:[#allocation2 + $0x1d8] sm:$0xff]
    %v112 = vld [vmem:[#allocation2 + $0x1e0] sm:$0xff]
    %v113 = vld [vmem:[#allocation2 + $0x1e8] sm:$0xff]
    %v114 = vld [vmem:[#allocation2 + $0x1f0] sm:$0xff]
    %v115 = vld [vmem:[#allocation2 + $0x1f8] sm:$0xff]
    %v116 = vld [vmem:[#allocation2 + $0x200] sm:$0xff]
    %v117 = vld [vmem:[#allocation2 + $0x208] sm:$0xff]
    %v118 = vld [vmem:[#allocation2 + $0x210] sm:$0xff]
    %v119 = vld [vmem:[#allocation2 + $0x218] sm:$0xff]
    %v120 = vld [vmem:[#allocation2 + $0x220] sm:$0xff]
    %v121 = vld [vmem:[#allocation2 + $0x228] sm:$0xff]
    %v122 = vld [vmem:[#allocation2 + $0x230] sm:$0xff]
    %v123 = vld [vmem:[#allocation2 + $0x238] sm:$0xff]
    %v124 = vld [vmem:[#allocation2 + $0x240] sm:$0xff]
    %v125 = vld [vmem:[#allocation2 + $0x248] sm:$0xff]
    %v126 = vld [vmem:[#allocation2 + $0x250] sm:$0xff]
    %v127 = vld [vmem:[#allocation2 + $0x258] sm:$0xff]
    %v128 = vld [vmem:[#allocation2 + $0x260] sm:$0xff]
    %v129 = vld [vmem:[#allocation2 + $0x268] sm:$0xff]
    %v130 = vld [vmem:[#allocation2 + $0x270] sm:$0xff]
    %v131 = vld [vmem:[#allocation2 + $0x278] sm:$0xff]
    %v132 = vld [vmem:[#allocation2 + $0x280] sm:$0xff]
    %v133 = vld [vmem:[#allocation2 + $0x288] sm:$0xff]
    %v134 = vld [vmem:[#allocation2 + $0x290] sm:$0xff]
    %v135 = vld [vmem:[#allocation2 + $0x298] sm:$0xff]
    %v136 = vld [vmem:[#allocation2 + $0x2a0] sm:$0xff]
    %v137 = vld [vmem:[#allocation2 + $0x2a8] sm:$0xff]
    %v138 = vld [vmem:[#allocation2 + $0x2b0] sm:$0xff]
    %v139 = vld [vmem:[#allocation2 + $0x2b8] sm:$0xff]
    %v140 = vld [vmem:[#allocation2 + $0x2c0] sm:$0xff]
    %v141 = vld [vmem:[#allocation2 + $0x2c8] sm:$0xff]
    %v142 = vld [vmem:[#allocation2 + $0x2d0] sm:$0xff]
    %v143 = vld [vmem:[#allocation2 + $0x2d8] sm:$0xff]
    %v144 = vld [vmem:[#allocation2 + $0x2e0] sm:$0xff]
    %v145 = vld [vmem:[#allocation2 + $0x2e8] sm:$0xff]
    %v146 = vld [vmem:[#allocation2 + $0x2f0] sm:$0xff]
    %v147 = vld [vmem:[#allocation2 + $0x2f8] sm:$0xff]
    %v148 = vld [vmem:[#allocation2 + $0x300] sm:$0xff]
    %v149 = vld [vmem:[#allocation2 + $0x308] sm:$0xff]
    %v150 = vld [vmem:[%s2] sm:$0x1]
    %v152 = vlaneseq
    %v153 = vshrl.u32 %v152, 7
    %v154 = vsub.s32 0, %v153
    %v155 = vrot.slane %v150, %v154
    %vm157 = vcmask 130048
    %v159 = vsel %vm157, %v51, 0
    %161 = vmatprep.subr.mxu0 0.0
    %162 = vmatpush1.msra.mxu0 %v52
    %163 = vmatprep.subr.mxu0 0.0
    %164 = vmatpush1.msra.mxu0 %v53
    %165 = vmatprep.subr.mxu0 0.0
    %166 = vmatpush1.msra.mxu0 %v54
    %167 = vmatprep.subr.mxu0 0.0
    %168 = vmatpush1.msra.mxu0 %v55
    %169 = vmatprep.subr.mxu0 0.0
    %170 = vmatpush1.msra.mxu0 %v56
    %171 = vmatprep.subr.mxu0 0.0
    %172 = vmatpush1.msra.mxu0 %v57
    %173 = vmatprep.subr.mxu0 0.0
    %174 = vmatpush1.msra.mxu0 %v58
    %175 = vmatprep.subr.mxu0 0.0
    %176 = vmatpush1.msra.mxu0 %v59
    %177 = vmatprep.subr.mxu0 0.0
    %178 = vmatpush1.msra.mxu0 %v60
    %179 = vmatprep.subr.mxu0 0.0
    %180 = vmatpush1.msra.mxu0 %v61
    %181 = vmatprep.subr.mxu0 0.0
    %182 = vmatpush1.msra.mxu0 %v62
    %183 = vmatprep.subr.mxu0 0.0
    %184 = vmatpush1.msra.mxu0 %v63
    %185 = vmatprep.subr.mxu0 0.0
    %186 = vmatpush1.msra.mxu0 %v64
    %187 = vmatprep.subr.mxu0 0.0
    %188 = vmatpush1.msra.mxu0 %v65
    %189 = vmatprep.subr.mxu0 0.0
    %190 = vmatpush1.msra.mxu0 %v66
    %191 = vmatprep.subr.mxu0 0.0
    %192 = vmatpush1.msra.mxu0 %v67
    %193 = vmatprep.subr.mxu0 0.0
    %194 = vmatpush1.msra.mxu0 %v68
    %195 = vmatprep.subr.mxu0 0.0
    %196 = vmatpush1.msra.mxu0 %v69
    %197 = vmatprep.subr.mxu0 0.0
    %198 = vmatpush1.msra.mxu0 %v70
    %199 = vmatprep.subr.mxu0 0.0
    %200 = vmatpush1.msra.mxu0 %v71
    %201 = vmatprep.subr.mxu0 0.0
    %202 = vmatpush1.msra.mxu0 %v72
    %203 = vmatprep.subr.mxu0 0.0
    %204 = vmatpush1.msra.mxu0 %v73
    %205 = vmatprep.subr.mxu0 0.0
    %206 = vmatpush1.msra.mxu0 %v74
    %207 = vmatprep.subr.mxu0 0.0
    %208 = vmatpush1.msra.mxu0 %v75
    %209 = vmatprep.subr.mxu0 0.0
    %210 = vmatpush1.msra.mxu0 %v76
    %211 = vmatprep.subr.mxu0 0.0
    %212 = vmatpush1.msra.mxu0 %v77
    %213 = vmatprep.subr.mxu0 0.0
    %214 = vmatpush1.msra.mxu0 %v78
    %215 = vmatprep.subr.mxu0 0.0
    %216 = vmatpush1.msra.mxu0 %v79
    %217 = vmatprep.subr.mxu0 0.0
    %218 = vmatpush1.msra.mxu0 %v80
    %219 = vmatprep.subr.mxu0 0.0
    %220 = vmatpush1.msra.mxu0 %v81
    %221 = vmatprep.subr.mxu0 0.0
    %222 = vmatpush1.msra.mxu0 %v82
    %223 = vmatprep.subr.mxu0 0.0
    %224 = vmatpush1.msra.mxu0 %v83
    %225 = vmatprep.mubr.f32.mxu0 %v46
    %226 = vmatmul.mubr.f32.gmra.mrb[0].mxu0 %v45
    %v227 = vpop.f32.mrb[0].mxu0
    %v228 = vadd.f32 %v155, %v227
    %v229 = vpop.f32.mrb[0].mxu0
    %230 = vdwg.mxu0
    %231 = vmatprep.subr.mxu0 0.0
    %232 = vmatpush1.msra.mxu0 %v84
    %233 = vmatprep.subr.mxu0 0.0
    %234 = vmatpush1.msra.mxu0 %v85
    %235 = vmatprep.subr.mxu0 0.0
    %236 = vmatpush1.msra.mxu0 %v86
    %237 = vmatprep.subr.mxu0 0.0
    %238 = vmatpush1.msra.mxu0 %v87
    %239 = vmatprep.subr.mxu0 0.0
    %240 = vmatpush1.msra.mxu0 %v88
    %241 = vmatprep.subr.mxu0 0.0
    %242 = vmatpush1.msra.mxu0 %v89
    %243 = vmatprep.subr.mxu0 0.0
    %244 = vmatpush1.msra.mxu0 %v90
    %245 = vmatprep.subr.mxu0 0.0
    %246 = vmatpush1.msra.mxu0 %v91
    %247 = vmatprep.subr.mxu0 0.0
    %248 = vmatpush1.msra.mxu0 %v92
    %249 = vmatprep.subr.mxu0 0.0
    %250 = vmatpush1.msra.mxu0 %v93
    %251 = vmatprep.subr.mxu0 0.0
    %252 = vmatpush1.msra.mxu0 %v94
    %253 = vmatprep.subr.mxu0 0.0
    %254 = vmatpush1.msra.mxu0 %v95
    %255 = vmatprep.subr.mxu0 0.0
    %256 = vmatpush1.msra.mxu0 %v96
    %257 = vmatprep.subr.mxu0 0.0
    %258 = vmatpush1.msra.mxu0 %v97
    %259 = vmatprep.subr.mxu0 0.0
    %260 = vmatpush1.msra.mxu0 %v98
    %261 = vmatprep.subr.mxu0 0.0
    %262 = vmatpush1.msra.mxu0 %v99
    %263 = vmatprep.subr.mxu0 0.0
    %264 = vmatpush1.msra.mxu0 %v100
    %265 = vmatprep.subr.mxu0 0.0
    %266 = vmatpush1.msra.mxu0 %v101
    %267 = vmatprep.subr.mxu0 0.0
    %268 = vmatpush1.msra.mxu0 %v102
    %269 = vmatprep.subr.mxu0 0.0
    %270 = vmatpush1.msra.mxu0 %v103
    %271 = vmatprep.subr.mxu0 0.0
    %272 = vmatpush1.msra.mxu0 %v104
    %273 = vmatprep.subr.mxu0 0.0
    %274 = vmatpush1.msra.mxu0 %v105
    %275 = vmatprep.subr.mxu0 0.0
    %276 = vmatpush1.msra.mxu0 %v106
    %277 = vmatprep.subr.mxu0 0.0
    %278 = vmatpush1.msra.mxu0 %v107
    %279 = vmatprep.subr.mxu0 0.0
    %280 = vmatpush1.msra.mxu0 %v108
    %281 = vmatprep.subr.mxu0 0.0
    %282 = vmatpush1.msra.mxu0 %v109
    %283 = vmatprep.subr.mxu0 0.0
    %284 = vmatpush1.msra.mxu0 %v110
    %285 = vmatprep.subr.mxu0 0.0
    %286 = vmatpush1.msra.mxu0 %v111
    %287 = vmatprep.subr.mxu0 0.0
    %288 = vmatpush1.msra.mxu0 %v112
    %289 = vmatprep.subr.mxu0 0.0
    %290 = vmatpush1.msra.mxu0 %v113
    %291 = vmatprep.subr.mxu0 0.0
    %292 = vmatpush1.msra.mxu0 %v114
    %293 = vmatprep.subr.mxu0 0.0
    %294 = vmatpush1.msra.mxu0 %v115
    %295 = vmatprep.mubr.f32.mxu0 %v48
    %296 = vmatmul.mubr.f32.gmra.mrb[0].mxu0 %v47
    %v297 = vpop.f32.mrb[0].mxu0
    %v298 = vadd.f32 %v228, %v297
    %v299 = vpop.f32.mrb[0].mxu0
    %300 = vdwg.mxu0
    %301 = vmatprep.subr.mxu0 0.0
    %302 = vmatpush1.msra.mxu0 %v116
    %303 = vmatprep.subr.mxu0 0.0
    %304 = vmatpush1.msra.mxu0 %v117
    %305 = vmatprep.subr.mxu0 0.0
    %306 = vmatpush1.msra.mxu0 %v118
    %307 = vmatprep.subr.mxu0 0.0
    %308 = vmatpush1.msra.mxu0 %v119
    %309 = vmatprep.subr.mxu0 0.0
    %310 = vmatpush1.msra.mxu0 %v120
    %311 = vmatprep.subr.mxu0 0.0
    %312 = vmatpush1.msra.mxu0 %v121
    %313 = vmatprep.subr.mxu0 0.0
    %314 = vmatpush1.msra.mxu0 %v122
    %315 = vmatprep.subr.mxu0 0.0
    %316 = vmatpush1.msra.mxu0 %v123
    %317 = vmatprep.subr.mxu0 0.0
    %318 = vmatpush1.msra.mxu0 %v124
    %319 = vmatprep.subr.mxu0 0.0
    %320 = vmatpush1.msra.mxu0 %v125
    %321 = vmatprep.subr.mxu0 0.0
    %322 = vmatpush1.msra.mxu0 %v126
    %323 = vmatprep.subr.mxu0 0.0
    %324 = vmatpush1.msra.mxu0 %v127
    %325 = vmatprep.subr.mxu0 0.0
    %326 = vmatpush1.msra.mxu0 %v128
    %327 = vmatprep.subr.mxu0 0.0
    %328 = vmatpush1.msra.mxu0 %v129
    %329 = vmatprep.subr.mxu0 0.0
    %330 = vmatpush1.msra.mxu0 %v130
    %331 = vmatprep.subr.mxu0 0.0
    %332 = vmatpush1.msra.mxu0 %v131
    %333 = vmatprep.subr.mxu0 0.0
    %334 = vmatpush1.msra.mxu0 %v132
    %335 = vmatprep.subr.mxu0 0.0
    %336 = vmatpush1.msra.mxu0 %v133
    %337 = vmatprep.subr.mxu0 0.0
    %338 = vmatpush1.msra.mxu0 %v134
    %339 = vmatprep.subr.mxu0 0.0
    %340 = vmatpush1.msra.mxu0 %v135
    %341 = vmatprep.subr.mxu0 0.0
    %342 = vmatpush1.msra.mxu0 %v136
    %343 = vmatprep.subr.mxu0 0.0
    %344 = vmatpush1.msra.mxu0 %v137
    %345 = vmatprep.subr.mxu0 0.0
    %346 = vmatpush1.msra.mxu0 %v138
    %347 = vmatprep.subr.mxu0 0.0
    %348 = vmatpush1.msra.mxu0 %v139
    %349 = vmatprep.subr.mxu0 0.0
    %350 = vmatpush1.msra.mxu0 %v140
    %351 = vmatprep.subr.mxu0 0.0
    %352 = vmatpush1.msra.mxu0 %v141
    %353 = vmatprep.subr.mxu0 0.0
    %354 = vmatpush1.msra.mxu0 %v142
    %355 = vmatprep.subr.mxu0 0.0
    %356 = vmatpush1.msra.mxu0 %v143
    %357 = vmatprep.subr.mxu0 0.0
    %358 = vmatpush1.msra.mxu0 %v144
    %359 = vmatprep.subr.mxu0 0.0
    %360 = vmatpush1.msra.mxu0 %v145
    %361 = vmatprep.subr.mxu0 0.0
    %362 = vmatpush1.msra.mxu0 %v146
    %363 = vmatprep.subr.mxu0 0.0
    %364 = vmatpush1.msra.mxu0 %v147
    %365 = vmatprep.mubr.f32.mxu0 %v50
    %366 = vmatmul.mubr.f32.gmra.mrb[0].mxu0 %v49
    %v367 = vpop.f32.mrb[0].mxu0
    %v368 = vadd.f32 %v298, %v367
    %v369 = vpop.f32.mrb[0].mxu0
    %370 = vdwg.mxu0
    %371 = vmatprep.subr.mxu0 0.0
    %372 = vmatpush1.msra.mxu0 %v148
    %373 = vmatprep.subr.mxu0 0.0
    %374 = vmatpush1.msra.mxu0 %v149
    %375 = vmatprep.subr.mxu0 0.0
    %376 = vmatpush1.msra.mxu0 0.0
    %377 = vmatprep.subr.mxu0 0.0
    %378 = vmatpush1.msra.mxu0 0.0
    %379 = vmatprep.subr.mxu0 0.0
    %380 = vmatpush1.msra.mxu0 0.0
    %381 = vmatprep.subr.mxu0 0.0
    %382 = vmatpush1.msra.mxu0 0.0
    %383 = vmatprep.subr.mxu0 0.0
    %384 = vmatpush1.msra.mxu0 0.0
    %385 = vmatprep.subr.mxu0 0.0
    %386 = vmatpush1.msra.mxu0 0.0
    %387 = vmatprep.subr.mxu0 0.0
    %388 = vmatpush1.msra.mxu0 0.0
    %389 = vmatprep.subr.mxu0 0.0
    %390 = vmatpush1.msra.mxu0 0.0
    %391 = vmatprep.subr.mxu0 0.0
    %392 = vmatpush1.msra.mxu0 0.0
    %393 = vmatprep.subr.mxu0 0.0
    %394 = vmatpush1.msra.mxu0 0.0
    %395 = vmatprep.subr.mxu0 0.0
    %396 = vmatpush1.msra.mxu0 0.0
    %397 = vmatprep.subr.mxu0 0.0
    %398 = vmatpush1.msra.mxu0 0.0
    %399 = vmatprep.subr.mxu0 0.0
    %400 = vmatpush1.msra.mxu0 0.0
    %401 = vmatprep.subr.mxu0 0.0
    %402 = vmatpush1.msra.mxu0 0.0
    %403 = vmatprep.subr.mxu0 0.0
    %404 = vmatpush1.msra.mxu0 0.0
    %405 = vmatprep.subr.mxu0 0.0
    %406 = vmatpush1.msra.mxu0 0.0
    %407 = vmatprep.subr.mxu0 0.0
    %408 = vmatpush1.msra.mxu0 0.0
    %409 = vmatprep.subr.mxu0 0.0
    %410 = vmatpush1.msra.mxu0 0.0
    %411 = vmatprep.subr.mxu0 0.0
    %412 = vmatpush1.msra.mxu0 0.0
    %413 = vmatprep.subr.mxu0 0.0
    %414 = vmatpush1.msra.mxu0 0.0
    %415 = vmatprep.subr.mxu0 0.0
    %416 = vmatpush1.msra.mxu0 0.0
    %417 = vmatprep.subr.mxu0 0.0
    %418 = vmatpush1.msra.mxu0 0.0
    %419 = vmatprep.subr.mxu0 0.0
    %420 = vmatpush1.msra.mxu0 0.0
    %421 = vmatprep.subr.mxu0 0.0
    %422 = vmatpush1.msra.mxu0 0.0
    %423 = vmatprep.subr.mxu0 0.0
    %424 = vmatpush1.msra.mxu0 0.0
    %425 = vmatprep.subr.mxu0 0.0
    %426 = vmatpush1.msra.mxu0 0.0
    %427 = vmatprep.subr.mxu0 0.0
    %428 = vmatpush1.msra.mxu0 0.0
    %429 = vmatprep.subr.mxu0 0.0
    %430 = vmatpush1.msra.mxu0 0.0
    %431 = vmatprep.subr.mxu0 0.0
    %432 = vmatpush1.msra.mxu0 0.0
    %433 = vmatprep.subr.mxu0 0.0
    %434 = vmatpush1.msra.mxu0 0.0
    %435 = vmatprep.mubr.f32.mxu0 0.0
    %436 = vmatmul.mubr.f32.gmra.mrb[0].mxu0 %v159
    %v437 = vpop.f32.mrb[0].mxu0
    %v438 = vadd.f32 %v368, %v437
    %v439 = vpop.f32.mrb[0].mxu0
    %440 = vdwg.mxu0
    %v441 = vand.u32 2147483647, %v438
    %v442 = vld [vmem:[#allocation4] sm:$0xff]
    %v443 = vld [vmem:[#allocation4 + $0x8] sm:$0xff]
    %v444 = vld [vmem:[#allocation4 + $0x10] sm:$0xff]
    %v445 = vld [vmem:[#allocation4 + $0x18] sm:$0xff]
    %v446 = vld [vmem:[#allocation4 + $0x20] sm:$0xff]
    %v447 = vld [vmem:[#allocation4 + $0x28] sm:$0xff]
    %v448 = vld [vmem:[#allocation4 + $0x30] sm:$0xff]
    %v449 = vld [vmem:[#allocation4 + $0x38] sm:$0xff]
    %v450 = vld [vmem:[#allocation4 + $0x40] sm:$0xff]
    %v451 = vld [vmem:[#allocation4 + $0x48] sm:$0xff]
    %v452 = vld [vmem:[#allocation4 + $0x50] sm:$0xff]
    %v453 = vld [vmem:[#allocation4 + $0x58] sm:$0xff]
    %v454 = vld [vmem:[#allocation4 + $0x60] sm:$0xff]
    %v455 = vld [vmem:[#allocation4 + $0x68] sm:$0xff]
    %v456 = vld [vmem:[#allocation4 + $0x70] sm:$0xff]
    %v457 = vld [vmem:[#allocation4 + $0x78] sm:$0xff]
    %458 = vmatprep.subr.mxu0 0.0
    %459 = vmatpush1.msra.mxu0 %v442
    %460 = vmatprep.subr.mxu0 0.0
    %461 = vmatpush1.msra.mxu0 %v443
    %462 = vmatprep.subr.mxu0 0.0
    %463 = vmatpush1.msra.mxu0 %v444
    %464 = vmatprep.subr.mxu0 0.0
    %465 = vmatpush1.msra.mxu0 %v445
    %466 = vmatprep.subr.mxu0 0.0
    %467 = vmatpush1.msra.mxu0 %v446
    %468 = vmatprep.subr.mxu0 0.0
    %469 = vmatpush1.msra.mxu0 %v447
    %470 = vmatprep.subr.mxu0 0.0
    %471 = vmatpush1.msra.mxu0 %v448
    %472 = vmatprep.subr.mxu0 0.0
    %473 = vmatpush1.msra.mxu0 %v449
    %474 = vmatprep.subr.mxu0 0.0
    %475 = vmatpush1.msra.mxu0 %v450
    %476 = vmatprep.subr.mxu0 0.0
    %477 = vmatpush1.msra.mxu0 %v451
    %478 = vmatprep.subr.mxu0 0.0
    %479 = vmatpush1.msra.mxu0 %v452
    %480 = vmatprep.subr.mxu0 0.0
    %481 = vmatpush1.msra.mxu0 %v453
    %482 = vmatprep.subr.mxu0 0.0
    %483 = vmatpush1.msra.mxu0 %v454
    %484 = vmatprep.subr.mxu0 0.0
    %485 = vmatpush1.msra.mxu0 %v455
    %486 = vmatprep.subr.mxu0 0.0
    %487 = vmatpush1.msra.mxu0 %v456
    %488 = vmatprep.subr.mxu0 0.0
    %489 = vmatpush1.msra.mxu0 %v457
    %490 = vmatprep.subr.mxu0 0.0
    %491 = vmatpush1.msra.mxu0 0.0
    %492 = vmatprep.subr.mxu0 0.0
    %493 = vmatpush1.msra.mxu0 0.0
    %494 = vmatprep.subr.mxu0 0.0
    %495 = vmatpush1.msra.mxu0 0.0
    %496 = vmatprep.subr.mxu0 0.0
    %497 = vmatpush1.msra.mxu0 0.0
    %498 = vmatprep.subr.mxu0 0.0
    %499 = vmatpush1.msra.mxu0 0.0
    %500 = vmatprep.subr.mxu0 0.0
    %501 = vmatpush1.msra.mxu0 0.0
    %502 = vmatprep.subr.mxu0 0.0
    %503 = vmatpush1.msra.mxu0 0.0
    %504 = vmatprep.subr.mxu0 0.0
    %505 = vmatpush1.msra.mxu0 0.0
    %506 = vmatprep.subr.mxu0 0.0
    %507 = vmatpush1.msra.mxu0 0.0
    %508 = vmatprep.subr.mxu0 0.0
    %509 = vmatpush1.msra.mxu0 0.0
    %510 = vmatprep.subr.mxu0 0.0
    %511 = vmatpush1.msra.mxu0 0.0
    %512 = vmatprep.subr.mxu0 0.0
    %513 = vmatpush1.msra.mxu0 0.0
    %514 = vmatprep.subr.mxu0 0.0
    %515 = vmatpush1.msra.mxu0 0.0
    %516 = vmatprep.subr.mxu0 0.0
    %517 = vmatpush1.msra.mxu0 0.0
    %518 = vmatprep.subr.mxu0 0.0
    %519 = vmatpush1.msra.mxu0 0.0
    %520 = vmatprep.subr.mxu0 0.0
    %521 = vmatpush1.msra.mxu0 0.0
    %522 = vmatprep.mubr.f32.mxu0 0.0
    %523 = vmatmul.mubr.f32.gmra.mrb[0].mxu0 %v441
    %v524 = vpop.f32.mrb[0].mxu0
    %v525 = vadd.f32 0.0, %v524
    %v526 = vpop.f32.mrb[0].mxu0
    %527 = vdwg.mxu0
    %v528 = vand.u32 2147483647, %v525
    %529 = vst [vmem:[%s4] sm:$0xff] %v528
    // Predicated region
    $region26: #{model_abs2_forward.1} parent=1 // pred_check
      _
    $region27: #{model_abs2_forward.1} parent=1 // pred_check_branch
      %531 = sbr.rel (0) target = $region29
    $region28: #{model_abs2_forward.1} parent=1 // pred_region
      _
    $region29: #{model_abs2_forward.1} parent=1 // pred_fallthru
      _
    // Predicated region
    $region30: #{model_abs2_forward.1} parent=1 // pred_check
      _
    $region31: #{model_abs2_forward.1} parent=1 // pred_check_branch
      %533 = sbr.rel (0) target = $region33
    $region32: #{model_abs2_forward.1} parent=1 // pred_region
      _
    $region33: #{model_abs2_forward.1} parent=1 // pred_fallthru
      _
    %534 = vsyncpa [#allocation3], 1
    %535 = vsyncpa [#allocation5], 1

</llo_original>
